<compile_context>
chip_gen: v6e
topology: v6e:2x2x1
jax: 0.10.0
libtpu: 0.0.40
codegen_flags: <defaults>
</compile_context>

<pallas_src>
import functools

import jax
import jax.numpy as jnp
from jax.experimental import pallas as pl
from jax.experimental.pallas import tpu as pltpu

LANE = 128       # vreg lane width
ROW_ALIGN = 16   # batch-tile row alignment (covers f32 (8,·) and bf16 (16,·) sublane packing)


def _round_up(n, m):
    return ((n + m - 1) // m) * m


def _cdiv(a, b):
    return (a + b - 1) // b


def qnet_kernel(x_ref, w1_ref, b1_ref, w2_ref, b2_ref, o_ref):
    # f32 path: force highest matmul precision for strict parity with PyTorch;
    # bf16 path: default precision (bf16 MXU with f32 accumulation).
    prec = (jax.lax.Precision.HIGHEST if x_ref.dtype == jnp.float32
            else jax.lax.Precision.DEFAULT)
    # fc1: (TB, S) @ (S, H_pad) + (1, H_pad), ReLU.  H_pad=128 keeps the hidden
    # activation lane-dense; it stays in VMEM so the padding costs nothing.
    h = jnp.dot(x_ref[...], w1_ref[...],
                preferred_element_type=jnp.float32, precision=prec)
    h = jnp.maximum(h + b1_ref[...], 0.0)   # bias add / ReLU stay f32 (native on v5e VPU)
    # out: (TB, H_pad) @ (H_pad, A) + (1, A) — true output width A, no padding,
    # so the writeback is a handful of (cheap) masked stores instead of 32x traffic.
    y = jnp.dot(h.astype(w2_ref.dtype), w2_ref[...],
                preferred_element_type=jnp.float32, precision=prec)
    o_ref[...] = (y + b2_ref[...]).astype(o_ref.dtype)


def prepare_qnet_params(w1, b1, w2, b2, *, use_bf16=False):
    """One-time parameter prep (hoisted out of the per-step forward).

    Pads the hidden dim to a lane-dense 128 and optionally casts the matmul
    operands to bf16 (biases stay f32; in-kernel accumulation is f32).
    w1: (S, 64), b1: (1, 64), w2: (64, A), b2: (1, A)."""
    H = w1.shape[1]
    H_pad = _round_up(H, LANE)
    w1_p = jnp.pad(w1, ((0, 0), (0, H_pad - H)))
    b1_p = jnp.pad(b1, ((0, 0), (0, H_pad - H)))
    w2_p = jnp.pad(w2, ((0, H_pad - H), (0, 0)))
    b2_p = b2
    if use_bf16:
        w1_p = w1_p.astype(jnp.bfloat16)
        w2_p = w2_p.astype(jnp.bfloat16)
    return w1_p, b1_p, w2_p, b2_p


@functools.partial(jax.jit, static_argnames=("tb_max",))
def q_net_forward(x, w1_p, b1_p, w2_p, b2_p, *, tb_max=4096):
    """x: (B, N_STATES); params come from prepare_qnet_params (already padded).
    Returns (B, N_ACTIONS) float32 Q-values."""
    B, S = x.shape
    H_pad = w1_p.shape[1]
    A = w2_p.shape[1]

    # Match the streamed activation dtype to the weights (bf16 fast path).
    if x.dtype != w1_p.dtype:
        x = x.astype(w1_p.dtype)

    # Batch tiling: split into >=2 grid steps when the batch is big enough so
    # the "parallel" axis can shard across v7x's 2 TensorCores (harmless on
    # single-TC v5e/v6e); cap tile rows at tb_max to stay inside scoped VMEM.
    B_aligned = _round_up(B, ROW_ALIGN)
    if B_aligned >= 2 * ROW_ALIGN:
        TB = min(tb_max, _round_up(_cdiv(B_aligned, 2), ROW_ALIGN))
    else:
        TB = B_aligned
    B_pad = _round_up(B, TB)

    if B_pad != B:  # pad only when needed (skip the extra HLO op when aligned)
        x = jnp.pad(x, ((0, B_pad - B), (0, 0)))

    grid = (B_pad // TB,)

    out = pl.pallas_call(
        qnet_kernel,
        out_shape=jax.ShapeDtypeStruct((B_pad, A), jnp.float32),
        grid_spec=pltpu.PrefetchScalarGridSpec(
            num_scalar_prefetch=0,
            grid=grid,
            in_specs=[
                pl.BlockSpec((TB, S), lambda i: (i, 0)),        # x: streamed per batch tile
                pl.BlockSpec((S, H_pad), lambda i: (0, 0)),     # w1: VMEM-resident
                pl.BlockSpec((1, H_pad), lambda i: (0, 0)),     # b1: VMEM-resident
                pl.BlockSpec((H_pad, A), lambda i: (0, 0)),     # w2: VMEM-resident
                pl.BlockSpec((1, A), lambda i: (0, 0)),         # b2: VMEM-resident
            ],
            out_specs=pl.BlockSpec((TB, A), lambda i: (i, 0)),  # true-width output, no A padding
        ),
        compiler_params=pltpu.CompilerParams(
            dimension_semantics=("parallel",),
        ),
    )(x, w1_p, b1_p, w2_p, b2_p)

    # Padded rows (if any) are garbage (ReLU(b1)@w2+b2), sliced off here.
    return out if B_pad == B else out[:B]


def init_q_net_params(key, n_states, n_actions, hidden=64):
    """Synthetic init matching the PyTorch module: weights ~ N(0, 0.1);
    biases use nn.Linear's default U(-1/sqrt(fan_in), 1/sqrt(fan_in))."""
    k1, k2, k3, k4 = jax.random.split(key, 4)
    # stored already transposed to (in, out) so the kernel computes x @ W + b
    w1 = 0.1 * jax.random.normal(k1, (n_states, hidden), dtype=jnp.float32)
    w2 = 0.1 * jax.random.normal(k2, (hidden, n_actions), dtype=jnp.float32)
    bnd1 = 1.0 / jnp.sqrt(jnp.float32(n_states))
    bnd2 = 1.0 / jnp.sqrt(jnp.float32(hidden))
    b1 = jax.random.uniform(k3, (1, hidden), jnp.float32, -bnd1, bnd1)
    b2 = jax.random.uniform(k4, (1, n_actions), jnp.float32, -bnd2, bnd2)
    return w1, b1, w2, b2


if __name__ == "__main__":
    N_STATES = 8
    N_ACTIONS = 4
    BATCH = 2

    key = jax.random.PRNGKey(0)
    kx, kp = jax.random.split(key)
    x = jax.random.normal(kx, (BATCH, N_STATES), dtype=jnp.float32)
    w1, b1, w2, b2 = init_q_net_params(kp, N_STATES, N_ACTIONS)

    def ref_fwd(xx):
        return jnp.maximum(xx @ w1 + b1, 0.0) @ w2 + b2

    # Parameters are padded/prepared ONCE, not per forward call.
    params_f32 = prepare_qnet_params(w1, b1, w2, b2)

    # Small-shape check (typical DQN action-selection usage).
    actions_value = q_net_forward(x, *params_f32)
    jax.block_until_ready(actions_value)
    assert actions_value.shape == (BATCH, N_ACTIONS)
    assert jnp.allclose(actions_value, ref_fwd(x), atol=1e-5, rtol=1e-5)

    # Batched check: exercises batch padding + a 2-step "parallel" grid.
    xb = jax.random.normal(jax.random.PRNGKey(1), (1000, N_STATES), dtype=jnp.float32)
    out_b = q_net_forward(xb, *params_f32)
    jax.block_until_ready(out_b)
    assert out_b.shape == (1000, N_ACTIONS)
    assert jnp.allclose(out_b, ref_fwd(xb), atol=1e-5, rtol=1e-5)

    # bf16 fast path (streamed operands bf16, f32 accumulation) — looser tolerance.
    params_bf16 = prepare_qnet_params(w1, b1, w2, b2, use_bf16=True)
    out_bf16 = q_net_forward(xb, *params_bf16)
    jax.block_until_ready(out_bf16)
    assert out_bf16.shape == (1000, N_ACTIONS)
    assert jnp.allclose(out_bf16, ref_fwd(xb), atol=3e-2, rtol=3e-2)

    print("KERNEL_OK")
</pallas_src>

<mosaic_0001>
module attributes {stable_mosaic.version = 11 : i64} {
  func.func @qnet_kernel(%arg0: i32, %arg1: memref<16x8xf32, #tpu.memory_space<vmem>>, %arg2: memref<8x128xf32, #tpu.memory_space<vmem>>, %arg3: memref<1x128xf32, #tpu.memory_space<vmem>>, %arg4: memref<128x4xf32, #tpu.memory_space<vmem>>, %arg5: memref<1x4xf32, #tpu.memory_space<vmem>>, %arg6: memref<16x4xf32, #tpu.memory_space<vmem>>) attributes {dimension_semantics = [#tpu.dimension_semantics<parallel>], iteration_bounds = array<i64: 1>, scalar_prefetch = 0 : i64, scratch_operands = 0 : i64, tpu.core_type = #tpu.core_type<tc>, window_params = [{transform_indices = @transform_0, window_bounds = array<i64: 16, 8>}, {pipeline_mode = #tpu.pipeline_mode<synchronous>, transform_indices = @transform_1, window_bounds = array<i64: 8, 128>}, {pipeline_mode = #tpu.pipeline_mode<synchronous>, transform_indices = @transform_2, window_bounds = array<i64: 1, 128>}, {pipeline_mode = #tpu.pipeline_mode<synchronous>, transform_indices = @transform_3, window_bounds = array<i64: 128, 4>}, {pipeline_mode = #tpu.pipeline_mode<synchronous>, transform_indices = @transform_4, window_bounds = array<i64: 1, 4>}, {transform_indices = @transform_5, window_bounds = array<i64: 16, 4>}]} {
    %c0 = arith.constant 0 : index
    %c0_0 = arith.constant 0 : index
    %0 = vector.load %arg1[%c0, %c0_0] : memref<16x8xf32, #tpu.memory_space<vmem>>, vector<16x8xf32>
    %c0_1 = arith.constant 0 : index
    %c0_2 = arith.constant 0 : index
    %1 = vector.load %arg2[%c0_1, %c0_2] : memref<8x128xf32, #tpu.memory_space<vmem>>, vector<8x128xf32>
    %cst = arith.constant dense<0.000000e+00> : vector<16x128xf32>
    %2 = tpu.matmul %0, %1, %cst {dimension_numbers = #tpu.dot_dimension_numbers<[1], [0], [0], [1], [0, 0, 1, 1], [], []>, precision = #tpu.contract_precision<fp32>} : vector<16x8xf32>, vector<8x128xf32>, vector<16x128xf32> -> vector<16x128xf32>
    %c0_3 = arith.constant 0 : index
    %c0_4 = arith.constant 0 : index
    %3 = vector.load %arg3[%c0_3, %c0_4] : memref<1x128xf32, #tpu.memory_space<vmem>>, vector<1x128xf32>
    %4 = vector.broadcast %3 : vector<1x128xf32> to vector<16x128xf32>
    %5 = arith.addf %2, %4 : vector<16x128xf32>
    %cst_5 = arith.constant 0.000000e+00 : f32
    %6 = vector.broadcast %cst_5 : f32 to vector<16x128xf32>
    %7 = arith.maximumf %5, %6 : vector<16x128xf32>
    %c0_6 = arith.constant 0 : index
    %c0_7 = arith.constant 0 : index
    %8 = vector.load %arg4[%c0_6, %c0_7] : memref<128x4xf32, #tpu.memory_space<vmem>>, vector<128x4xf32>
    %cst_8 = arith.constant dense<0.000000e+00> : vector<16x4xf32>
    %9 = tpu.matmul %7, %8, %cst_8 {dimension_numbers = #tpu.dot_dimension_numbers<[1], [0], [0], [1], [0, 0, 1, 1], [], []>, precision = #tpu.contract_precision<fp32>} : vector<16x128xf32>, vector<128x4xf32>, vector<16x4xf32> -> vector<16x4xf32>
    %c0_9 = arith.constant 0 : index
    %c0_10 = arith.constant 0 : index
    %10 = vector.load %arg5[%c0_9, %c0_10] : memref<1x4xf32, #tpu.memory_space<vmem>>, vector<1x4xf32>
    %11 = vector.broadcast %10 : vector<1x4xf32> to vector<16x4xf32>
    %12 = arith.addf %9, %11 : vector<16x4xf32>
    %c0_11 = arith.constant 0 : index
    %c0_12 = arith.constant 0 : index
    %13 = vector.load %arg6[%c0_11, %c0_12] : memref<16x4xf32, #tpu.memory_space<vmem>>, vector<16x4xf32>
    tpu.vector_store %arg6[%c0_11, %c0_12], %12 {strides = array<i32>} : memref<16x4xf32, #tpu.memory_space<vmem>>, vector<16x4xf32>,
    return
  }
  func.func @transform_0(%arg0: i32) -> (i32, i32) {
    %c0_i32 = arith.constant 0 : i32
    %c0_i32_0 = arith.constant 0 : i32
    return %arg0, %c0_i32 : i32, i32
  }
  func.func @transform_1(%arg0: i32) -> (i32, i32) {
    %c0_i32 = arith.constant 0 : i32
    %c0_i32_0 = arith.constant 0 : i32
    %c0_i32_1 = arith.constant 0 : i32
    return %c0_i32, %c0_i32_0 : i32, i32
  }
  func.func @transform_2(%arg0: i32) -> (i32, i32) {
    %c0_i32 = arith.constant 0 : i32
    %c0_i32_0 = arith.constant 0 : i32
    %c0_i32_1 = arith.constant 0 : i32
    return %c0_i32, %c0_i32_0 : i32, i32
  }
  func.func @transform_3(%arg0: i32) -> (i32, i32) {
    %c0_i32 = arith.constant 0 : i32
    %c0_i32_0 = arith.constant 0 : i32
    %c0_i32_1 = arith.constant 0 : i32
    return %c0_i32, %c0_i32_0 : i32, i32
  }
  func.func @transform_4(%arg0: i32) -> (i32, i32) {
    %c0_i32 = arith.constant 0 : i32
    %c0_i32_0 = arith.constant 0 : i32
    %c0_i32_1 = arith.constant 0 : i32
    return %c0_i32, %c0_i32_0 : i32, i32
  }
  func.func @transform_5(%arg0: i32) -> (i32, i32) {
    %c0_i32 = arith.constant 0 : i32
    %c0_i32_0 = arith.constant 0 : i32
    return %arg0, %c0_i32 : i32, i32
  }
}

</mosaic_0001>

<llo_original>
// kernel: q_net_forward.1
$region0: #{q_net_forward.1}
  #allocation0 [shape = 'u32[]', space=smem, size = 0x4, offset = 0x4, fixed_abs, tag = 'smem constant byte address 0x4 - core index']
  #allocation1 [shape = 'u32[144,128]{1,0:T(1,128)}', space=vmem, size = 0x12000, scoped, tag = 'internal scratch']
  %s0 = inlined_call_operand.vmem [shape: f32[16,8], index: 0, kind: input, shape index: {}]
  %s1 = inlined_call_operand.vmem [shape: f32[8,128], index: 1, kind: input, shape index: {}]
  %s2 = inlined_call_operand.vmem [shape: f32[1,128], index: 2, kind: input, shape index: {}]
  %s3 = inlined_call_operand.vmem [shape: f32[128,4], index: 3, kind: input, shape index: {}]
  %s4 = inlined_call_operand.vmem [shape: f32[1,4], index: 4, kind: input, shape index: {}]
  %s5 = inlined_call_operand.vmem [shape: f32[16,4], index: 5, kind: output, shape index: {}]
  %s6 = sld [smem:[#allocation0]]
  $region30: #{q_net_forward.1} parent=0
    _
  %s8 = ssub.s32 1, %s6
  %s9 = scalar_select 0, %s8, %s6
  // Predicated region
  $region2: #{q_net_forward.1} parent=0 // pred_check
    _
  $region3: #{q_net_forward.1} parent=0 // pred_check_branch
    %11 = sbr.rel (0) target = $region5
  $region4: #{q_net_forward.1} parent=0 // pred_region
    _
  $region5: #{q_net_forward.1} parent=0 // pred_fallthru
    _
  // Predicated region
  $region6: #{q_net_forward.1} parent=0 // pred_check
    _
  $region7: #{q_net_forward.1} parent=0 // pred_check_branch
    %13 = sbr.rel (0) target = $region9
  $region8: #{q_net_forward.1} parent=0 // pred_region
    _
  $region9: #{q_net_forward.1} parent=0 // pred_fallthru
    _
  // Predicated region
  $region10: #{q_net_forward.1} parent=0 // pred_check
    _
  $region11: #{q_net_forward.1} parent=0 // pred_check_branch
    %15 = sbr.rel (0) target = $region13
  $region12: #{q_net_forward.1} parent=0 // pred_region
    _
  $region13: #{q_net_forward.1} parent=0 // pred_fallthru
    _
  // Predicated region
  $region14: #{q_net_forward.1} parent=0 // pred_check
    _
  $region15: #{q_net_forward.1} parent=0 // pred_check_branch
    %17 = sbr.rel (0) target = $region17
  $region16: #{q_net_forward.1} parent=0 // pred_region
    _
  $region17: #{q_net_forward.1} parent=0 // pred_fallthru
    _
  // Predicated region
  $region18: #{q_net_forward.1} parent=0 // pred_check
    _
  $region19: #{q_net_forward.1} parent=0 // pred_check_branch
    %19 = sbr.rel (0) target = $region21
  $region20: #{q_net_forward.1} parent=0 // pred_region
    _
  $region21: #{q_net_forward.1} parent=0 // pred_fallthru
    _
  %v20 = vld [vmem:[%s0] sm:$0xff]
  %v21 = vld [vmem:[%s0 + $0x8] sm:$0xff]
  %v22 = vld [vmem:[%s1] sm:$0xff]
  %v23 = vld [vmem:[%s2] sm:$0x1]
  %v25 = vlaneseq
  %v26 = vshrl.u32 %v25, 7
  %v27 = vsub.s32 0, %v26
  %v28 = vrot.slane %v23, %v27
  %vm30 = vcmask 64512
  %v32 = vsel %vm30, %v20, 0
  %v35 = vsel %vm30, %v21, 0
  %37 = vmatprep.subr.mxu0 0.0
  %38 = vmatpush1.msra.mxu0 0.0
  %39 = vmatprep.subr.mxu0 0.0
  %40 = vmatpush1.msra.mxu0 0.0
  %41 = vmatprep.subr.mxu0 0.0
  %42 = vmatpush1.msra.mxu0 0.0
  %43 = vmatprep.subr.mxu0 0.0
  %44 = vmatpush1.msra.mxu0 0.0
  %45 = vmatprep.subr.mxu0 0.0
  %46 = vmatpush1.msra.mxu0 0.0
  %47 = vmatprep.subr.mxu0 0.0
  %48 = vmatpush1.msra.mxu0 0.0
  %49 = vmatprep.subr.mxu0 0.0
  %50 = vmatpush1.msra.mxu0 0.0
  %51 = vmatprep.subr.mxu0 0.0
  %52 = vmatpush1.msra.mxu0 0.0
  %53 = vmatprep.subr.mxu0 0.0
  %54 = vmatpush1.msra.mxu0 0.0
  %55 = vmatprep.subr.mxu0 0.0
  %56 = vmatpush1.msra.mxu0 0.0
  %57 = vmatprep.subr.mxu0 0.0
  %58 = vmatpush1.msra.mxu0 0.0
  %59 = vmatprep.subr.mxu0 0.0
  %60 = vmatpush1.msra.mxu0 0.0
  %61 = vmatprep.subr.mxu0 0.0
  %62 = vmatpush1.msra.mxu0 0.0
  %63 = vmatprep.subr.mxu0 0.0
  %64 = vmatpush1.msra.mxu0 0.0
  %65 = vmatprep.subr.mxu0 0.0
  %66 = vmatpush1.msra.mxu0 0.0
  %67 = vmatprep.subr.mxu0 0.0
  %v68 = vand.u32 %v22, 4294901760
  %69 = vmatpush1.msra.mxu0 %v68
  %70 = vmatprep.subr.mxu0 0.0
  %71 = vmatpush2.msra.mxu0 0.0
  %72 = vmatprep.subr.mxu0 0.0
  %73 = vmatpush2.msra.mxu0 0.0
  %74 = vmatprep.subr.mxu0 0.0
  %75 = vmatpush2.msra.mxu0 0.0
  %76 = vmatprep.subr.mxu0 0.0
  %77 = vmatpush2.msra.mxu0 0.0
  %78 = vmatprep.subr.mxu0 0.0
  %79 = vmatpush2.msra.mxu0 0.0
  %80 = vmatprep.subr.mxu0 0.0
  %81 = vmatpush2.msra.mxu0 0.0
  %82 = vmatprep.subr.mxu0 0.0
  %83 = vmatpush2.msra.mxu0 0.0
  %84 = vmatprep.subr.mxu0 0.0
  %85 = vmatpush2.msra.mxu0 0.0
  %86 = vmatprep.subr.mxu0 0.0
  %87 = vmatpush2.msra.mxu0 0.0
  %88 = vmatprep.subr.mxu0 0.0
  %89 = vmatpush2.msra.mxu0 0.0
  %90 = vmatprep.subr.mxu0 0.0
  %91 = vmatpush2.msra.mxu0 0.0
  %92 = vmatprep.subr.mxu0 0.0
  %93 = vmatpush2.msra.mxu0 0.0
  %94 = vmatprep.subr.mxu0 0.0
  %95 = vmatpush2.msra.mxu0 0.0
  %96 = vmatprep.subr.mxu0 0.0
  %97 = vmatpush2.msra.mxu0 0.0
  %98 = vmatprep.subr.mxu0 0.0
  %99 = vmatpush2.msra.mxu0 0.0
  %100 = vmatprep.subr.mxu0 0.0
  %101 = vmatpush2.msra.mxu0 0.0
  %102 = vmatprep.mubr.f32.mxu0 0.0
  %v103 = vand.u32 %v32, 4294901760
  %v104 = vsub.f32 %v32, %v103
  %v105 = vand.u32 %v104, 4294901760
  %v106 = vsub.f32 %v104, %v105
  %v107 = vand.u32 %v106, 4294901760
  %108 = vmatmul.mubr.f32.gmra.mxu0 %v107
  %v109 = vpop.f32.mrf.mxu0
  %v110 = vadd.f32 %v28, %v109
  %v111 = vpop.f32.mrf.mxu0
  %112 = vmatprep.mubr.f32.mxu0 0.0
  %v113 = vand.u32 %v35, 4294901760
  %v114 = vsub.f32 %v35, %v113
  %v115 = vand.u32 %v114, 4294901760
  %v116 = vsub.f32 %v114, %v115
  %v117 = vand.u32 %v116, 4294901760
  %118 = vmatmul.mubr.f32.gmra.mxu0 %v117
  %v119 = vpop.f32.mrf.mxu0
  %v120 = vadd.f32 %v28, %v119
  %v121 = vpop.f32.mrf.mxu0
  %122 = vdwg.mxu0
  %123 = vmatprep.subr.mxu0 0.0
  %124 = vmatpush1.msra.mxu0 0.0
  %125 = vmatprep.subr.mxu0 0.0
  %126 = vmatpush1.msra.mxu0 0.0
  %127 = vmatprep.subr.mxu0 0.0
  %128 = vmatpush1.msra.mxu0 0.0
  %129 = vmatprep.subr.mxu0 0.0
  %130 = vmatpush1.msra.mxu0 0.0
  %131 = vmatprep.subr.mxu0 0.0
  %132 = vmatpush1.msra.mxu0 0.0
  %133 = vmatprep.subr.mxu0 0.0
  %134 = vmatpush1.msra.mxu0 0.0
  %135 = vmatprep.subr.mxu0 0.0
  %136 = vmatpush1.msra.mxu0 0.0
  %137 = vmatprep.subr.mxu0 0.0
  %138 = vmatpush1.msra.mxu0 0.0
  %139 = vmatprep.subr.mxu0 0.0
  %140 = vmatpush1.msra.mxu0 0.0
  %141 = vmatprep.subr.mxu0 0.0
  %142 = vmatpush1.msra.mxu0 0.0
  %143 = vmatprep.subr.mxu0 0.0
  %144 = vmatpush1.msra.mxu0 0.0
  %145 = vmatprep.subr.mxu0 0.0
  %146 = vmatpush1.msra.mxu0 0.0
  %147 = vmatprep.subr.mxu0 0.0
  %148 = vmatpush1.msra.mxu0 0.0
  %149 = vmatprep.subr.mxu0 0.0
  %150 = vmatpush1.msra.mxu0 0.0
  %151 = vmatprep.subr.mxu0 0.0
  %152 = vmatpush1.msra.mxu0 0.0
  %153 = vmatprep.subr.mxu0 0.0
  %v154 = vand.u32 %v22, 4294901760
  %v155 = vsub.f32 %v22, %v154
  %v156 = vand.u32 %v155, 4294901760
  %v157 = vsub.f32 %v155, %v156
  %v158 = vand.u32 %v157, 4294901760
  %159 = vmatpush1.msra.mxu0 %v158
  %160 = vmatprep.subr.mxu0 0.0
  %161 = vmatpush2.msra.mxu0 0.0
  %162 = vmatprep.subr.mxu0 0.0
  %163 = vmatpush2.msra.mxu0 0.0
  %164 = vmatprep.subr.mxu0 0.0
  %165 = vmatpush2.msra.mxu0 0.0
  %166 = vmatprep.subr.mxu0 0.0
  %167 = vmatpush2.msra.mxu0 0.0
  %168 = vmatprep.subr.mxu0 0.0
  %169 = vmatpush2.msra.mxu0 0.0
  %170 = vmatprep.subr.mxu0 0.0
  %171 = vmatpush2.msra.mxu0 0.0
  %172 = vmatprep.subr.mxu0 0.0
  %173 = vmatpush2.msra.mxu0 0.0
  %174 = vmatprep.subr.mxu0 0.0
  %175 = vmatpush2.msra.mxu0 0.0
  %176 = vmatprep.subr.mxu0 0.0
  %177 = vmatpush2.msra.mxu0 0.0
  %178 = vmatprep.subr.mxu0 0.0
  %179 = vmatpush2.msra.mxu0 0.0
  %180 = vmatprep.subr.mxu0 0.0
  %181 = vmatpush2.msra.mxu0 0.0
  %182 = vmatprep.subr.mxu0 0.0
  %183 = vmatpush2.msra.mxu0 0.0
  %184 = vmatprep.subr.mxu0 0.0
  %185 = vmatpush2.msra.mxu0 0.0
  %186 = vmatprep.subr.mxu0 0.0
  %187 = vmatpush2.msra.mxu0 0.0
  %188 = vmatprep.subr.mxu0 0.0
  %189 = vmatpush2.msra.mxu0 0.0
  %190 = vmatprep.subr.mxu0 0.0
  %191 = vmatpush2.msra.mxu0 0.0
  %192 = vmatprep.mubr.f32.mxu0 0.0
  %v193 = vand.u32 %v32, 4294901760
  %194 = vmatmul.mubr.f32.gmra.mxu0 %v193
  %v195 = vpop.f32.mrf.mxu0
  %v196 = vadd.f32 %v110, %v195
  %v197 = vpop.f32.mrf.mxu0
  %198 = vmatprep.mubr.f32.mxu0 0.0
  %v199 = vand.u32 %v35, 4294901760
  %200 = vmatmul.mubr.f32.gmra.mxu0 %v199
  %v201 = vpop.f32.mrf.mxu0
  %v202 = vadd.f32 %v120, %v201
  %v203 = vpop.f32.mrf.mxu0
  %204 = vdwg.mxu0
  %205 = vmatprep.subr.mxu0 0.0
  %206 = vmatpush1.msra.mxu0 0.0
  %207 = vmatprep.subr.mxu0 0.0
  %208 = vmatpush1.msra.mxu0 0.0
  %209 = vmatprep.subr.mxu0 0.0
  %210 = vmatpush1.msra.mxu0 0.0
  %211 = vmatprep.subr.mxu0 0.0
  %212 = vmatpush1.msra.mxu0 0.0
  %213 = vmatprep.subr.mxu0 0.0
  %214 = vmatpush1.msra.mxu0 0.0
  %215 = vmatprep.subr.mxu0 0.0
  %216 = vmatpush1.msra.mxu0 0.0
  %217 = vmatprep.subr.mxu0 0.0
  %218 = vmatpush1.msra.mxu0 0.0
  %219 = vmatprep.subr.mxu0 0.0
  %220 = vmatpush1.msra.mxu0 0.0
  %221 = vmatprep.subr.mxu0 0.0
  %222 = vmatpush1.msra.mxu0 0.0
  %223 = vmatprep.subr.mxu0 0.0
  %224 = vmatpush1.msra.mxu0 0.0
  %225 = vmatprep.subr.mxu0 0.0
  %226 = vmatpush1.msra.mxu0 0.0
  %227 = vmatprep.subr.mxu0 0.0
  %228 = vmatpush1.msra.mxu0 0.0
  %229 = vmatprep.subr.mxu0 0.0
  %230 = vmatpush1.msra.mxu0 0.0
  %231 = vmatprep.subr.mxu0 0.0
  %232 = vmatpush1.msra.mxu0 0.0
  %233 = vmatprep.subr.mxu0 0.0
  %234 = vmatpush1.msra.mxu0 0.0
  %235 = vmatprep.subr.mxu0 0.0
  %v236 = vand.u32 %v22, 4294901760
  %v237 = vsub.f32 %v22, %v236
  %238 = vmatpush1.msra.mxu0 %v237
  %239 = vmatprep.subr.mxu0 0.0
  %240 = vmatpush2.msra.mxu0 0.0
  %241 = vmatprep.subr.mxu0 0.0
  %242 = vmatpush2.msra.mxu0 0.0
  %243 = vmatprep.subr.mxu0 0.0
  %244 = vmatpush2.msra.mxu0 0.0
  %245 = vmatprep.subr.mxu0 0.0
  %246 = vmatpush2.msra.mxu0 0.0
  %247 = vmatprep.subr.mxu0 0.0
  %248 = vmatpush2.msra.mxu0 0.0
  %249 = vmatprep.subr.mxu0 0.0
  %250 = vmatpush2.msra.mxu0 0.0
  %251 = vmatprep.subr.mxu0 0.0
  %252 = vmatpush2.msra.mxu0 0.0
  %253 = vmatprep.subr.mxu0 0.0
  %254 = vmatpush2.msra.mxu0 0.0
  %255 = vmatprep.subr.mxu0 0.0
  %256 = vmatpush2.msra.mxu0 0.0
  %257 = vmatprep.subr.mxu0 0.0
  %258 = vmatpush2.msra.mxu0 0.0
  %259 = vmatprep.subr.mxu0 0.0
  %260 = vmatpush2.msra.mxu0 0.0
  %261 = vmatprep.subr.mxu0 0.0
  %262 = vmatpush2.msra.mxu0 0.0
  %263 = vmatprep.subr.mxu0 0.0
  %264 = vmatpush2.msra.mxu0 0.0
  %265 = vmatprep.subr.mxu0 0.0
  %266 = vmatpush2.msra.mxu0 0.0
  %267 = vmatprep.subr.mxu0 0.0
  %268 = vmatpush2.msra.mxu0 0.0
  %269 = vmatprep.subr.mxu0 0.0
  %270 = vmatpush2.msra.mxu0 0.0
  %271 = vmatprep.mubr.f32.mxu0 0.0
  %v272 = vand.u32 %v32, 4294901760
  %v273 = vsub.f32 %v32, %v272
  %274 = vmatmul.mubr.f32.gmra.mxu0 %v273
  %v275 = vpop.f32.mrf.mxu0
  %v276 = vadd.f32 %v196, %v275
  %v277 = vpop.f32.mrf.mxu0
  %278 = vmatprep.mubr.f32.mxu0 0.0
  %v279 = vand.u32 %v35, 4294901760
  %v280 = vsub.f32 %v35, %v279
  %281 = vmatmul.mubr.f32.gmra.mxu0 %v280
  %v282 = vpop.f32.mrf.mxu0
  %v283 = vadd.f32 %v202, %v282
  %v284 = vpop.f32.mrf.mxu0
  %285 = vdwg.mxu0
  %286 = vmatprep.subr.mxu0 0.0
  %287 = vmatpush1.msra.mxu0 0.0
  %288 = vmatprep.subr.mxu0 0.0
  %289 = vmatpush1.msra.mxu0 0.0
  %290 = vmatprep.subr.mxu0 0.0
  %291 = vmatpush1.msra.mxu0 0.0
  %292 = vmatprep.subr.mxu0 0.0
  %293 = vmatpush1.msra.mxu0 0.0
  %294 = vmatprep.subr.mxu0 0.0
  %295 = vmatpush1.msra.mxu0 0.0
  %296 = vmatprep.subr.mxu0 0.0
  %297 = vmatpush1.msra.mxu0 0.0
  %298 = vmatprep.subr.mxu0 0.0
  %299 = vmatpush1.msra.mxu0 0.0
  %300 = vmatprep.subr.mxu0 0.0
  %301 = vmatpush1.msra.mxu0 0.0
  %302 = vmatprep.subr.mxu0 0.0
  %303 = vmatpush1.msra.mxu0 0.0
  %304 = vmatprep.subr.mxu0 0.0
  %305 = vmatpush1.msra.mxu0 0.0
  %306 = vmatprep.subr.mxu0 0.0
  %307 = vmatpush1.msra.mxu0 0.0
  %308 = vmatprep.subr.mxu0 0.0
  %309 = vmatpush1.msra.mxu0 0.0
  %310 = vmatprep.subr.mxu0 0.0
  %311 = vmatpush1.msra.mxu0 0.0
  %312 = vmatprep.subr.mxu0 0.0
  %313 = vmatpush1.msra.mxu0 0.0
  %314 = vmatprep.subr.mxu0 0.0
  %315 = vmatpush1.msra.mxu0 0.0
  %316 = vmatprep.subr.mxu0 0.0
  %v317 = vand.u32 %v22, 4294901760
  %318 = vmatpush1.msra.mxu0 %v317
  %319 = vmatprep.subr.mxu0 0.0
  %320 = vmatpush2.msra.mxu0 0.0
  %321 = vmatprep.subr.mxu0 0.0
  %322 = vmatpush2.msra.mxu0 0.0
  %323 = vmatprep.subr.mxu0 0.0
  %324 = vmatpush2.msra.mxu0 0.0
  %325 = vmatprep.subr.mxu0 0.0
  %326 = vmatpush2.msra.mxu0 0.0
  %327 = vmatprep.subr.mxu0 0.0
  %328 = vmatpush2.msra.mxu0 0.0
  %329 = vmatprep.subr.mxu0 0.0
  %330 = vmatpush2.msra.mxu0 0.0
  %331 = vmatprep.subr.mxu0 0.0
  %332 = vmatpush2.msra.mxu0 0.0
  %333 = vmatprep.subr.mxu0 0.0
  %334 = vmatpush2.msra.mxu0 0.0
  %335 = vmatprep.subr.mxu0 0.0
  %336 = vmatpush2.msra.mxu0 0.0
  %337 = vmatprep.subr.mxu0 0.0
  %338 = vmatpush2.msra.mxu0 0.0
  %339 = vmatprep.subr.mxu0 0.0
  %340 = vmatpush2.msra.mxu0 0.0
  %341 = vmatprep.subr.mxu0 0.0
  %342 = vmatpush2.msra.mxu0 0.0
  %343 = vmatprep.subr.mxu0 0.0
  %344 = vmatpush2.msra.mxu0 0.0
  %345 = vmatprep.subr.mxu0 0.0
  %346 = vmatpush2.msra.mxu0 0.0
  %347 = vmatprep.subr.mxu0 0.0
  %348 = vmatpush2.msra.mxu0 0.0
  %349 = vmatprep.subr.mxu0 0.0
  %350 = vmatpush2.msra.mxu0 0.0
  %351 = vmatprep.mubr.f32.mxu0 0.0
  %v352 = vand.u32 %v32, 4294901760
  %v353 = vsub.f32 %v32, %v352
  %v354 = vand.u32 %v353, 4294901760
  %355 = vmatmul.mubr.f32.gmra.mxu0 %v354
  %v356 = vpop.f32.mrf.mxu0
  %v357 = vadd.f32 %v276, %v356
  %v358 = vpop.f32.mrf.mxu0
  %359 = vmatprep.mubr.f32.mxu0 0.0
  %v360 = vand.u32 %v35, 4294901760
  %v361 = vsub.f32 %v35, %v360
  %v362 = vand.u32 %v361, 4294901760
  %363 = vmatmul.mubr.f32.gmra.mxu0 %v362
  %v364 = vpop.f32.mrf.mxu0
  %v365 = vadd.f32 %v283, %v364
  %v366 = vpop.f32.mrf.mxu0
  %367 = vdwg.mxu0
  %368 = vmatprep.subr.mxu0 0.0
  %369 = vmatpush1.msra.mxu0 0.0
  %370 = vmatprep.subr.mxu0 0.0
  %371 = vmatpush1.msra.mxu0 0.0
  %372 = vmatprep.subr.mxu0 0.0
  %373 = vmatpush1.msra.mxu0 0.0
  %374 = vmatprep.subr.mxu0 0.0
  %375 = vmatpush1.msra.mxu0 0.0
  %376 = vmatprep.subr.mxu0 0.0
  %377 = vmatpush1.msra.mxu0 0.0
  %378 = vmatprep.subr.mxu0 0.0
  %379 = vmatpush1.msra.mxu0 0.0
  %380 = vmatprep.subr.mxu0 0.0
  %381 = vmatpush1.msra.mxu0 0.0
  %382 = vmatprep.subr.mxu0 0.0
  %383 = vmatpush1.msra.mxu0 0.0
  %384 = vmatprep.subr.mxu0 0.0
  %385 = vmatpush1.msra.mxu0 0.0
  %386 = vmatprep.subr.mxu0 0.0
  %387 = vmatpush1.msra.mxu0 0.0
  %388 = vmatprep.subr.mxu0 0.0
  %389 = vmatpush1.msra.mxu0 0.0
  %390 = vmatprep.subr.mxu0 0.0
  %391 = vmatpush1.msra.mxu0 0.0
  %392 = vmatprep.subr.mxu0 0.0
  %393 = vmatpush1.msra.mxu0 0.0
  %394 = vmatprep.subr.mxu0 0.0
  %395 = vmatpush1.msra.mxu0 0.0
  %396 = vmatprep.subr.mxu0 0.0
  %397 = vmatpush1.msra.mxu0 0.0
  %398 = vmatprep.subr.mxu0 0.0
  %v399 = vand.u32 %v22, 4294901760
  %v400 = vsub.f32 %v22, %v399
  %v401 = vand.u32 %v400, 4294901760
  %402 = vmatpush1.msra.mxu0 %v401
  %403 = vmatprep.subr.mxu0 0.0
  %404 = vmatpush2.msra.mxu0 0.0
  %405 = vmatprep.subr.mxu0 0.0
  %406 = vmatpush2.msra.mxu0 0.0
  %407 = vmatprep.subr.mxu0 0.0
  %408 = vmatpush2.msra.mxu0 0.0
  %409 = vmatprep.subr.mxu0 0.0
  %410 = vmatpush2.msra.mxu0 0.0
  %411 = vmatprep.subr.mxu0 0.0
  %412 = vmatpush2.msra.mxu0 0.0
  %413 = vmatprep.subr.mxu0 0.0
  %414 = vmatpush2.msra.mxu0 0.0
  %415 = vmatprep.subr.mxu0 0.0
  %416 = vmatpush2.msra.mxu0 0.0
  %417 = vmatprep.subr.mxu0 0.0
  %418 = vmatpush2.msra.mxu0 0.0
  %419 = vmatprep.subr.mxu0 0.0
  %420 = vmatpush2.msra.mxu0 0.0
  %421 = vmatprep.subr.mxu0 0.0
  %422 = vmatpush2.msra.mxu0 0.0
  %423 = vmatprep.subr.mxu0 0.0
  %424 = vmatpush2.msra.mxu0 0.0
  %425 = vmatprep.subr.mxu0 0.0
  %426 = vmatpush2.msra.mxu0 0.0
  %427 = vmatprep.subr.mxu0 0.0
  %428 = vmatpush2.msra.mxu0 0.0
  %429 = vmatprep.subr.mxu0 0.0
  %430 = vmatpush2.msra.mxu0 0.0
  %431 = vmatprep.subr.mxu0 0.0
  %432 = vmatpush2.msra.mxu0 0.0
  %433 = vmatprep.subr.mxu0 0.0
  %434 = vmatpush2.msra.mxu0 0.0
  %435 = vmatprep.mubr.f32.mxu0 0.0
  %v436 = vand.u32 %v32, 4294901760
  %437 = vmatmul.mubr.f32.gmra.mxu0 %v436
  %v438 = vpop.f32.mrf.mxu0
  %v439 = vadd.f32 %v357, %v438
  %v440 = vpop.f32.mrf.mxu0
  %441 = vmatprep.mubr.f32.mxu0 0.0
  %v442 = vand.u32 %v35, 4294901760
  %443 = vmatmul.mubr.f32.gmra.mxu0 %v442
  %v444 = vpop.f32.mrf.mxu0
  %v445 = vadd.f32 %v365, %v444
  %v446 = vpop.f32.mrf.mxu0
  %447 = vdwg.mxu0
  %448 = vmatprep.subr.mxu0 0.0
  %449 = vmatpush1.msra.mxu0 0.0
  %450 = vmatprep.subr.mxu0 0.0
  %451 = vmatpush1.msra.mxu0 0.0
  %452 = vmatprep.subr.mxu0 0.0
  %453 = vmatpush1.msra.mxu0 0.0
  %454 = vmatprep.subr.mxu0 0.0
  %455 = vmatpush1.msra.mxu0 0.0
  %456 = vmatprep.subr.mxu0 0.0
  %457 = vmatpush1.msra.mxu0 0.0
  %458 = vmatprep.subr.mxu0 0.0
  %459 = vmatpush1.msra.mxu0 0.0
  %460 = vmatprep.subr.mxu0 0.0
  %461 = vmatpush1.msra.mxu0 0.0
  %462 = vmatprep.subr.mxu0 0.0
  %463 = vmatpush1.msra.mxu0 0.0
  %464 = vmatprep.subr.mxu0 0.0
  %465 = vmatpush1.msra.mxu0 0.0
  %466 = vmatprep.subr.mxu0 0.0
  %467 = vmatpush1.msra.mxu0 0.0
  %468 = vmatprep.subr.mxu0 0.0
  %469 = vmatpush1.msra.mxu0 0.0
  %470 = vmatprep.subr.mxu0 0.0
  %471 = vmatpush1.msra.mxu0 0.0
  %472 = vmatprep.subr.mxu0 0.0
  %473 = vmatpush1.msra.mxu0 0.0
  %474 = vmatprep.subr.mxu0 0.0
  %475 = vmatpush1.msra.mxu0 0.0
  %476 = vmatprep.subr.mxu0 0.0
  %477 = vmatpush1.msra.mxu0 0.0
  %478 = vmatprep.subr.mxu0 0.0
  %v479 = vand.u32 %v22, 4294901760
  %480 = vmatpush1.msra.mxu0 %v479
  %481 = vmatprep.subr.mxu0 0.0
  %482 = vmatpush2.msra.mxu0 0.0
  %483 = vmatprep.subr.mxu0 0.0
  %484 = vmatpush2.msra.mxu0 0.0
  %485 = vmatprep.subr.mxu0 0.0
  %486 = vmatpush2.msra.mxu0 0.0
  %487 = vmatprep.subr.mxu0 0.0
  %488 = vmatpush2.msra.mxu0 0.0
  %489 = vmatprep.subr.mxu0 0.0
  %490 = vmatpush2.msra.mxu0 0.0
  %491 = vmatprep.subr.mxu0 0.0
  %492 = vmatpush2.msra.mxu0 0.0
  %493 = vmatprep.subr.mxu0 0.0
  %494 = vmatpush2.msra.mxu0 0.0
  %495 = vmatprep.subr.mxu0 0.0
  %496 = vmatpush2.msra.mxu0 0.0
  %497 = vmatprep.subr.mxu0 0.0
  %498 = vmatpush2.msra.mxu0 0.0
  %499 = vmatprep.subr.mxu0 0.0
  %500 = vmatpush2.msra.mxu0 0.0
  %501 = vmatprep.subr.mxu0 0.0
  %502 = vmatpush2.msra.mxu0 0.0
  %503 = vmatprep.subr.mxu0 0.0
  %504 = vmatpush2.msra.mxu0 0.0
  %505 = vmatprep.subr.mxu0 0.0
  %506 = vmatpush2.msra.mxu0 0.0
  %507 = vmatprep.subr.mxu0 0.0
  %508 = vmatpush2.msra.mxu0 0.0
  %509 = vmatprep.subr.mxu0 0.0
  %510 = vmatpush2.msra.mxu0 0.0
  %511 = vmatprep.subr.mxu0 0.0
  %512 = vmatpush2.msra.mxu0 0.0
  %513 = vmatprep.mubr.f32.mxu0 0.0
  %v514 = vand.u32 %v32, 4294901760
  %515 = vmatmul.mubr.f32.gmra.mxu0 %v514
  %v516 = vpop.f32.mrf.mxu0
  %v517 = vadd.f32 %v439, %v516
  %v518 = vpop.f32.mrf.mxu0
  %519 = vmatprep.mubr.f32.mxu0 0.0
  %v520 = vand.u32 %v35, 4294901760
  %521 = vmatmul.mubr.f32.gmra.mxu0 %v520
  %v522 = vpop.f32.mrf.mxu0
  %v523 = vadd.f32 %v445, %v522
  %v524 = vpop.f32.mrf.mxu0
  %525 = vdwg.mxu0
  %v526 = vmax.f32 %v517, 0.0
  %v527 = vmax.f32 %v523, 0.0
  %v528 = vld [vmem:[%s3] sm:$0xff]
  %v529 = vld [vmem:[%s3 + $0x8] sm:$0xff]
  %v530 = vld [vmem:[%s3 + $0x10] sm:$0xff]
  %v531 = vld [vmem:[%s3 + $0x18] sm:$0xff]
  %v532 = vld [vmem:[%s3 + $0x20] sm:$0xff]
  %v533 = vld [vmem:[%s3 + $0x28] sm:$0xff]
  %v534 = vld [vmem:[%s3 + $0x30] sm:$0xff]
  %v535 = vld [vmem:[%s3 + $0x38] sm:$0xff]
  %v536 = vld [vmem:[%s3 + $0x40] sm:$0xff]
  %v537 = vld [vmem:[%s3 + $0x48] sm:$0xff]
  %v538 = vld [vmem:[%s3 + $0x50] sm:$0xff]
  %v539 = vld [vmem:[%s3 + $0x58] sm:$0xff]
  %v540 = vld [vmem:[%s3 + $0x60] sm:$0xff]
  %v541 = vld [vmem:[%s3 + $0x68] sm:$0xff]
  %v542 = vld [vmem:[%s3 + $0x70] sm:$0xff]
  %v543 = vld [vmem:[%s3 + $0x78] sm:$0xff]
  %v544 = vld [vmem:[%s4] sm:$0x1]
  %v546 = vlaneseq
  %v547 = vshrl.u32 %v546, 7
  %v548 = vsub.s32 0, %v547
  %v549 = vrot.slane %v544, %v548
  %551 = vmatprep.subr.mxu0 0.0
  %v552 = vand.u32 %v543, 4294901760
  %553 = vmatpush1.msra.mxu0 %v552
  %554 = vmatprep.subr.mxu0 0.0
  %v555 = vand.u32 %v542, 4294901760
  %556 = vmatpush1.msra.mxu0 %v555
  %557 = vmatprep.subr.mxu0 0.0
  %v558 = vand.u32 %v541, 4294901760
  %559 = vmatpush1.msra.mxu0 %v558
  %560 = vmatprep.subr.mxu0 0.0
  %v561 = vand.u32 %v540, 4294901760
  %562 = vmatpush1.msra.mxu0 %v561
  %563 = vmatprep.subr.mxu0 0.0
  %v564 = vand.u32 %v539, 4294901760
  %565 = vmatpush1.msra.mxu0 %v564
  %566 = vmatprep.subr.mxu0 0.0
  %v567 = vand.u32 %v538, 4294901760
  %568 = vmatpush1.msra.mxu0 %v567
  %569 = vmatprep.subr.mxu0 0.0
  %v570 = vand.u32 %v537, 4294901760
  %571 = vmatpush1.msra.mxu0 %v570
  %572 = vmatprep.subr.mxu0 0.0
  %v573 = vand.u32 %v536, 4294901760
  %574 = vmatpush1.msra.mxu0 %v573
  %575 = vmatprep.subr.mxu0 0.0
  %v576 = vand.u32 %v535, 4294901760
  %577 = vmatpush1.msra.mxu0 %v576
  %578 = vmatprep.subr.mxu0 0.0
  %v579 = vand.u32 %v534, 4294901760
  %580 = vmatpush1.msra.mxu0 %v579
  %581 = vmatprep.subr.mxu0 0.0
  %v582 = vand.u32 %v533, 4294901760
  %583 = vmatpush1.msra.mxu0 %v582
  %584 = vmatprep.subr.mxu0 0.0
  %v585 = vand.u32 %v532, 4294901760
  %586 = vmatpush1.msra.mxu0 %v585
  %587 = vmatprep.subr.mxu0 0.0
  %v588 = vand.u32 %v531, 4294901760
  %589 = vmatpush1.msra.mxu0 %v588
  %590 = vmatprep.subr.mxu0 0.0
  %v591 = vand.u32 %v530, 4294901760
  %592 = vmatpush1.msra.mxu0 %v591
  %593 = vmatprep.subr.mxu0 0.0
  %v594 = vand.u32 %v529, 4294901760
  %595 = vmatpush1.msra.mxu0 %v594
  %596 = vmatprep.subr.mxu0 0.0
  %v597 = vand.u32 %v528, 4294901760
  %598 = vmatpush1.msra.mxu0 %v597
  %599 = vmatprep.subr.mxu0 0.0
  %600 = vmatpush2.msra.mxu0 0.0
  %601 = vmatprep.subr.mxu0 0.0
  %602 = vmatpush2.msra.mxu0 0.0
  %603 = vmatprep.subr.mxu0 0.0
  %604 = vmatpush2.msra.mxu0 0.0
  %605 = vmatprep.subr.mxu0 0.0
  %606 = vmatpush2.msra.mxu0 0.0
  %607 = vmatprep.subr.mxu0 0.0
  %608 = vmatpush2.msra.mxu0 0.0
  %609 = vmatprep.subr.mxu0 0.0
  %610 = vmatpush2.msra.mxu0 0.0
  %611 = vmatprep.subr.mxu0 0.0
  %612 = vmatpush2.msra.mxu0 0.0
  %613 = vmatprep.subr.mxu0 0.0
  %614 = vmatpush2.msra.mxu0 0.0
  %615 = vmatprep.subr.mxu0 0.0
  %616 = vmatpush2.msra.mxu0 0.0
  %617 = vmatprep.subr.mxu0 0.0
  %618 = vmatpush2.msra.mxu0 0.0
  %619 = vmatprep.subr.mxu0 0.0
  %620 = vmatpush2.msra.mxu0 0.0
  %621 = vmatprep.subr.mxu0 0.0
  %622 = vmatpush2.msra.mxu0 0.0
  %623 = vmatprep.subr.mxu0 0.0
  %624 = vmatpush2.msra.mxu0 0.0
  %625 = vmatprep.subr.mxu0 0.0
  %626 = vmatpush2.msra.mxu0 0.0
  %627 = vmatprep.subr.mxu0 0.0
  %628 = vmatpush2.msra.mxu0 0.0
  %629 = vmatprep.subr.mxu0 0.0
  %630 = vmatpush2.msra.mxu0 0.0
  %631 = vmatprep.mubr.f32.mxu0 0.0
  %v632 = vand.u32 %v526, 4294901760
  %v633 = vsub.f32 %v526, %v632
  %v634 = vand.u32 %v633, 4294901760
  %v635 = vsub.f32 %v633, %v634
  %v636 = vand.u32 %v635, 4294901760
  %637 = vmatmul.mubr.f32.gmra.mxu0 %v636
  %v638 = vpop.f32.mrf.mxu0
  %v639 = vadd.f32 %v549, %v638
  %v640 = vpop.f32.mrf.mxu0
  %641 = vmatprep.mubr.f32.mxu0 0.0
  %v642 = vand.u32 %v527, 4294901760
  %v643 = vsub.f32 %v527, %v642
  %v644 = vand.u32 %v643, 4294901760
  %v645 = vsub.f32 %v643, %v644
  %v646 = vand.u32 %v645, 4294901760
  %647 = vmatmul.mubr.f32.gmra.mxu0 %v646
  %v648 = vpop.f32.mrf.mxu0
  %v649 = vadd.f32 %v549, %v648
  %v650 = vpop.f32.mrf.mxu0
  %651 = vdwg.mxu0
  %652 = vmatprep.subr.mxu0 0.0
  %v653 = vand.u32 %v543, 4294901760
  %v654 = vsub.f32 %v543, %v653
  %v655 = vand.u32 %v654, 4294901760
  %v656 = vsub.f32 %v654, %v655
  %v657 = vand.u32 %v656, 4294901760
  %658 = vmatpush1.msra.mxu0 %v657
  %659 = vmatprep.subr.mxu0 0.0
  %v660 = vand.u32 %v542, 4294901760
  %v661 = vsub.f32 %v542, %v660
  %v662 = vand.u32 %v661, 4294901760
  %v663 = vsub.f32 %v661, %v662
  %v664 = vand.u32 %v663, 4294901760
  %665 = vmatpush1.msra.mxu0 %v664
  %666 = vmatprep.subr.mxu0 0.0
  %v667 = vand.u32 %v541, 4294901760
  %v668 = vsub.f32 %v541, %v667
  %v669 = vand.u32 %v668, 4294901760
  %v670 = vsub.f32 %v668, %v669
  %v671 = vand.u32 %v670, 4294901760
  %672 = vmatpush1.msra.mxu0 %v671
  %673 = vmatprep.subr.mxu0 0.0
  %v674 = vand.u32 %v540, 4294901760
  %v675 = vsub.f32 %v540, %v674
  %v676 = vand.u32 %v675, 4294901760
  %v677 = vsub.f32 %v675, %v676
  %v678 = vand.u32 %v677, 4294901760
  %679 = vmatpush1.msra.mxu0 %v678
  %680 = vmatprep.subr.mxu0 0.0
  %v681 = vand.u32 %v539, 4294901760
  %v682 = vsub.f32 %v539, %v681
  %v683 = vand.u32 %v682, 4294901760
  %v684 = vsub.f32 %v682, %v683
  %v685 = vand.u32 %v684, 4294901760
  %686 = vmatpush1.msra.mxu0 %v685
  %687 = vmatprep.subr.mxu0 0.0
  %v688 = vand.u32 %v538, 4294901760
  %v689 = vsub.f32 %v538, %v688
  %v690 = vand.u32 %v689, 4294901760
  %v691 = vsub.f32 %v689, %v690
  %v692 = vand.u32 %v691, 4294901760
  %693 = vmatpush1.msra.mxu0 %v692
  %694 = vmatprep.subr.mxu0 0.0
  %v695 = vand.u32 %v537, 4294901760
  %v696 = vsub.f32 %v537, %v695
  %v697 = vand.u32 %v696, 4294901760
  %v698 = vsub.f32 %v696, %v697
  %v699 = vand.u32 %v698, 4294901760
  %700 = vmatpush1.msra.mxu0 %v699
  %701 = vmatprep.subr.mxu0 0.0
  %v702 = vand.u32 %v536, 4294901760
  %v703 = vsub.f32 %v536, %v702
  %v704 = vand.u32 %v703, 4294901760
  %v705 = vsub.f32 %v703, %v704
  %v706 = vand.u32 %v705, 4294901760
  %707 = vmatpush1.msra.mxu0 %v706
  %708 = vmatprep.subr.mxu0 0.0
  %v709 = vand.u32 %v535, 4294901760
  %v710 = vsub.f32 %v535, %v709
  %v711 = vand.u32 %v710, 4294901760
  %v712 = vsub.f32 %v710, %v711
  %v713 = vand.u32 %v712, 4294901760
  %714 = vmatpush1.msra.mxu0 %v713
  %715 = vmatprep.subr.mxu0 0.0
  %v716 = vand.u32 %v534, 4294901760
  %v717 = vsub.f32 %v534, %v716
  %v718 = vand.u32 %v717, 4294901760
  %v719 = vsub.f32 %v717, %v718
  %v720 = vand.u32 %v719, 4294901760
  %721 = vmatpush1.msra.mxu0 %v720
  %722 = vmatprep.subr.mxu0 0.0
  %v723 = vand.u32 %v533, 4294901760
  %v724 = vsub.f32 %v533, %v723
  %v725 = vand.u32 %v724, 4294901760
  %v726 = vsub.f32 %v724, %v725
  %v727 = vand.u32 %v726, 4294901760
  %728 = vmatpush1.msra.mxu0 %v727
  %729 = vmatprep.subr.mxu0 0.0
  %v730 = vand.u32 %v532, 4294901760
  %v731 = vsub.f32 %v532, %v730
  %v732 = vand.u32 %v731, 4294901760
  %v733 = vsub.f32 %v731, %v732
  %v734 = vand.u32 %v733, 4294901760
  %735 = vmatpush1.msra.mxu0 %v734
  %736 = vmatprep.subr.mxu0 0.0
  %v737 = vand.u32 %v531, 4294901760
  %v738 = vsub.f32 %v531, %v737
  %v739 = vand.u32 %v738, 4294901760
  %v740 = vsub.f32 %v738, %v739
  %v741 = vand.u32 %v740, 4294901760
  %742 = vmatpush1.msra.mxu0 %v741
  %743 = vmatprep.subr.mxu0 0.0
  %v744 = vand.u32 %v530, 4294901760
  %v745 = vsub.f32 %v530, %v744
  %v746 = vand.u32 %v745, 4294901760
  %v747 = vsub.f32 %v745, %v746
  %v748 = vand.u32 %v747, 4294901760
  %749 = vmatpush1.msra.mxu0 %v748
  %750 = vmatprep.subr.mxu0 0.0
  %v751 = vand.u32 %v529, 4294901760
  %v752 = vsub.f32 %v529, %v751
  %v753 = vand.u32 %v752, 4294901760
  %v754 = vsub.f32 %v752, %v753
  %v755 = vand.u32 %v754, 4294901760
  %756 = vmatpush1.msra.mxu0 %v755
  %757 = vmatprep.subr.mxu0 0.0
  %v758 = vand.u32 %v528, 4294901760
  %v759 = vsub.f32 %v528, %v758
  %v760 = vand.u32 %v759, 4294901760
  %v761 = vsub.f32 %v759, %v760
  %v762 = vand.u32 %v761, 4294901760
  %763 = vmatpush1.msra.mxu0 %v762
  %764 = vmatprep.subr.mxu0 0.0
  %765 = vmatpush2.msra.mxu0 0.0
  %766 = vmatprep.subr.mxu0 0.0
  %767 = vmatpush2.msra.mxu0 0.0
  %768 = vmatprep.subr.mxu0 0.0
  %769 = vmatpush2.msra.mxu0 0.0
  %770 = vmatprep.subr.mxu0 0.0
  %771 = vmatpush2.msra.mxu0 0.0
  %772 = vmatprep.subr.mxu0 0.0
  %773 = vmatpush2.msra.mxu0 0.0
  %774 = vmatprep.subr.mxu0 0.0
  %775 = vmatpush2.msra.mxu0 0.0
  %776 = vmatprep.subr.mxu0 0.0
  %777 = vmatpush2.msra.mxu0 0.0
  %778 = vmatprep.subr.mxu0 0.0
  %779 = vmatpush2.msra.mxu0 0.0
  %780 = vmatprep.subr.mxu0 0.0
  %781 = vmatpush2.msra.mxu0 0.0
  %782 = vmatprep.subr.mxu0 0.0
  %783 = vmatpush2.msra.mxu0 0.0
  %784 = vmatprep.subr.mxu0 0.0
  %785 = vmatpush2.msra.mxu0 0.0
  %786 = vmatprep.subr.mxu0 0.0
  %787 = vmatpush2.msra.mxu0 0.0
  %788 = vmatprep.subr.mxu0 0.0
  %789 = vmatpush2.msra.mxu0 0.0
  %790 = vmatprep.subr.mxu0 0.0
  %791 = vmatpush2.msra.mxu0 0.0
  %792 = vmatprep.subr.mxu0 0.0
  %793 = vmatpush2.msra.mxu0 0.0
  %794 = vmatprep.subr.mxu0 0.0
  %795 = vmatpush2.msra.mxu0 0.0
  %796 = vmatprep.mubr.f32.mxu0 0.0
  %v797 = vand.u32 %v526, 4294901760
  %798 = vmatmul.mubr.f32.gmra.mxu0 %v797
  %v799 = vpop.f32.mrf.mxu0
  %v800 = vadd.f32 %v639, %v799
  %v801 = vpop.f32.mrf.mxu0
  %802 = vmatprep.mubr.f32.mxu0 0.0
  %v803 = vand.u32 %v527, 4294901760
  %804 = vmatmul.mubr.f32.gmra.mxu0 %v803
  %v805 = vpop.f32.mrf.mxu0
  %v806 = vadd.f32 %v649, %v805
  %v807 = vpop.f32.mrf.mxu0
  %808 = vdwg.mxu0
  %809 = vmatprep.subr.mxu0 0.0
  %v810 = vand.u32 %v543, 4294901760
  %v811 = vsub.f32 %v543, %v810
  %812 = vmatpush1.msra.mxu0 %v811
  %813 = vmatprep.subr.mxu0 0.0
  %v814 = vand.u32 %v542, 4294901760
  %v815 = vsub.f32 %v542, %v814
  %816 = vmatpush1.msra.mxu0 %v815
  %817 = vmatprep.subr.mxu0 0.0
  %v818 = vand.u32 %v541, 4294901760
  %v819 = vsub.f32 %v541, %v818
  %820 = vmatpush1.msra.mxu0 %v819
  %821 = vmatprep.subr.mxu0 0.0
  %v822 = vand.u32 %v540, 4294901760
  %v823 = vsub.f32 %v540, %v822
  %824 = vmatpush1.msra.mxu0 %v823
  %825 = vmatprep.subr.mxu0 0.0
  %v826 = vand.u32 %v539, 4294901760
  %v827 = vsub.f32 %v539, %v826
  %828 = vmatpush1.msra.mxu0 %v827
  %829 = vmatprep.subr.mxu0 0.0
  %v830 = vand.u32 %v538, 4294901760
  %v831 = vsub.f32 %v538, %v830
  %832 = vmatpush1.msra.mxu0 %v831
  %833 = vmatprep.subr.mxu0 0.0
  %v834 = vand.u32 %v537, 4294901760
  %v835 = vsub.f32 %v537, %v834
  %836 = vmatpush1.msra.mxu0 %v835
  %837 = vmatprep.subr.mxu0 0.0
  %v838 = vand.u32 %v536, 4294901760
  %v839 = vsub.f32 %v536, %v838
  %840 = vmatpush1.msra.mxu0 %v839
  %841 = vmatprep.subr.mxu0 0.0
  %v842 = vand.u32 %v535, 4294901760
  %v843 = vsub.f32 %v535, %v842
  %844 = vmatpush1.msra.mxu0 %v843
  %845 = vmatprep.subr.mxu0 0.0
  %v846 = vand.u32 %v534, 4294901760
  %v847 = vsub.f32 %v534, %v846
  %848 = vmatpush1.msra.mxu0 %v847
  %849 = vmatprep.subr.mxu0 0.0
  %v850 = vand.u32 %v533, 4294901760
  %v851 = vsub.f32 %v533, %v850
  %852 = vmatpush1.msra.mxu0 %v851
  %853 = vmatprep.subr.mxu0 0.0
  %v854 = vand.u32 %v532, 4294901760
  %v855 = vsub.f32 %v532, %v854
  %856 = vmatpush1.msra.mxu0 %v855
  %857 = vmatprep.subr.mxu0 0.0
  %v858 = vand.u32 %v531, 4294901760
  %v859 = vsub.f32 %v531, %v858
  %860 = vmatpush1.msra.mxu0 %v859
  %861 = vmatprep.subr.mxu0 0.0
  %v862 = vand.u32 %v530, 4294901760
  %v863 = vsub.f32 %v530, %v862
  %864 = vmatpush1.msra.mxu0 %v863
  %865 = vmatprep.subr.mxu0 0.0
  %v866 = vand.u32 %v529, 4294901760
  %v867 = vsub.f32 %v529, %v866
  %868 = vmatpush1.msra.mxu0 %v867
  %869 = vmatprep.subr.mxu0 0.0
  %v870 = vand.u32 %v528, 4294901760
  %v871 = vsub.f32 %v528, %v870
  %872 = vmatpush1.msra.mxu0 %v871
  %873 = vmatprep.subr.mxu0 0.0
  %874 = vmatpush2.msra.mxu0 0.0
  %875 = vmatprep.subr.mxu0 0.0
  %876 = vmatpush2.msra.mxu0 0.0
  %877 = vmatprep.subr.mxu0 0.0
  %878 = vmatpush2.msra.mxu0 0.0
  %879 = vmatprep.subr.mxu0 0.0
  %880 = vmatpush2.msra.mxu0 0.0
  %881 = vmatprep.subr.mxu0 0.0
  %882 = vmatpush2.msra.mxu0 0.0
  %883 = vmatprep.subr.mxu0 0.0
  %884 = vmatpush2.msra.mxu0 0.0
  %885 = vmatprep.subr.mxu0 0.0
  %886 = vmatpush2.msra.mxu0 0.0
  %887 = vmatprep.subr.mxu0 0.0
  %888 = vmatpush2.msra.mxu0 0.0
  %889 = vmatprep.subr.mxu0 0.0
  %890 = vmatpush2.msra.mxu0 0.0
  %891 = vmatprep.subr.mxu0 0.0
  %892 = vmatpush2.msra.mxu0 0.0
  %893 = vmatprep.subr.mxu0 0.0
  %894 = vmatpush2.msra.mxu0 0.0
  %895 = vmatprep.subr.mxu0 0.0
  %896 = vmatpush2.msra.mxu0 0.0
  %897 = vmatprep.subr.mxu0 0.0
  %898 = vmatpush2.msra.mxu0 0.0
  %899 = vmatprep.subr.mxu0 0.0
  %900 = vmatpush2.msra.mxu0 0.0
  %901 = vmatprep.subr.mxu0 0.0
  %902 = vmatpush2.msra.mxu0 0.0
  %903 = vmatprep.subr.mxu0 0.0
  %904 = vmatpush2.msra.mxu0 0.0
  %905 = vmatprep.mubr.f32.mxu0 0.0
  %v906 = vand.u32 %v526, 4294901760
  %v907 = vsub.f32 %v526, %v906
  %908 = vmatmul.mubr.f32.gmra.mxu0 %v907
  %v909 = vpop.f32.mrf.mxu0
  %v910 = vadd.f32 %v800, %v909
  %v911 = vpop.f32.mrf.mxu0
  %912 = vmatprep.mubr.f32.mxu0 0.0
  %v913 = vand.u32 %v527, 4294901760
  %v914 = vsub.f32 %v527, %v913
  %915 = vmatmul.mubr.f32.gmra.mxu0 %v914
  %v916 = vpop.f32.mrf.mxu0
  %v917 = vadd.f32 %v806, %v916
  %v918 = vpop.f32.mrf.mxu0
  %919 = vdwg.mxu0
  %920 = vmatprep.subr.mxu0 0.0
  %v921 = vand.u32 %v543, 4294901760
  %922 = vmatpush1.msra.mxu0 %v921
  %923 = vmatprep.subr.mxu0 0.0
  %v924 = vand.u32 %v542, 4294901760
  %925 = vmatpush1.msra.mxu0 %v924
  %926 = vmatprep.subr.mxu0 0.0
  %v927 = vand.u32 %v541, 4294901760
  %928 = vmatpush1.msra.mxu0 %v927
  %929 = vmatprep.subr.mxu0 0.0
  %v930 = vand.u32 %v540, 4294901760
  %931 = vmatpush1.msra.mxu0 %v930
  %932 = vmatprep.subr.mxu0 0.0
  %v933 = vand.u32 %v539, 4294901760
  %934 = vmatpush1.msra.mxu0 %v933
  %935 = vmatprep.subr.mxu0 0.0
  %v936 = vand.u32 %v538, 4294901760
  %937 = vmatpush1.msra.mxu0 %v936
  %938 = vmatprep.subr.mxu0 0.0
  %v939 = vand.u32 %v537, 4294901760
  %940 = vmatpush1.msra.mxu0 %v939
  %941 = vmatprep.subr.mxu0 0.0
  %v942 = vand.u32 %v536, 4294901760
  %943 = vmatpush1.msra.mxu0 %v942
  %944 = vmatprep.subr.mxu0 0.0
  %v945 = vand.u32 %v535, 4294901760
  %946 = vmatpush1.msra.mxu0 %v945
  %947 = vmatprep.subr.mxu0 0.0
  %v948 = vand.u32 %v534, 4294901760
  %949 = vmatpush1.msra.mxu0 %v948
  %950 = vmatprep.subr.mxu0 0.0
  %v951 = vand.u32 %v533, 4294901760
  %952 = vmatpush1.msra.mxu0 %v951
  %953 = vmatprep.subr.mxu0 0.0
  %v954 = vand.u32 %v532, 4294901760
  %955 = vmatpush1.msra.mxu0 %v954
  %956 = vmatprep.subr.mxu0 0.0
  %v957 = vand.u32 %v531, 4294901760
  %958 = vmatpush1.msra.mxu0 %v957
  %959 = vmatprep.subr.mxu0 0.0
  %v960 = vand.u32 %v530, 4294901760
  %961 = vmatpush1.msra.mxu0 %v960
  %962 = vmatprep.subr.mxu0 0.0
  %v963 = vand.u32 %v529, 4294901760
  %964 = vmatpush1.msra.mxu0 %v963
  %965 = vmatprep.subr.mxu0 0.0
  %v966 = vand.u32 %v528, 4294901760
  %967 = vmatpush1.msra.mxu0 %v966
  %968 = vmatprep.subr.mxu0 0.0
  %969 = vmatpush2.msra.mxu0 0.0
  %970 = vmatprep.subr.mxu0 0.0
  %971 = vmatpush2.msra.mxu0 0.0
  %972 = vmatprep.subr.mxu0 0.0
  %973 = vmatpush2.msra.mxu0 0.0
  %974 = vmatprep.subr.mxu0 0.0
  %975 = vmatpush2.msra.mxu0 0.0
  %976 = vmatprep.subr.mxu0 0.0
  %977 = vmatpush2.msra.mxu0 0.0
  %978 = vmatprep.subr.mxu0 0.0
  %979 = vmatpush2.msra.mxu0 0.0
  %980 = vmatprep.subr.mxu0 0.0
  %981 = vmatpush2.msra.mxu0 0.0
  %982 = vmatprep.subr.mxu0 0.0
  %983 = vmatpush2.msra.mxu0 0.0
  %984 = vmatprep.subr.mxu0 0.0
  %985 = vmatpush2.msra.mxu0 0.0
  %986 = vmatprep.subr.mxu0 0.0
  %987 = vmatpush2.msra.mxu0 0.0
  %988 = vmatprep.subr.mxu0 0.0
  %989 = vmatpush2.msra.mxu0 0.0
  %990 = vmatprep.subr.mxu0 0.0
  %991 = vmatpush2.msra.mxu0 0.0
  %992 = vmatprep.subr.mxu0 0.0
  %993 = vmatpush2.msra.mxu0 0.0
  %994 = vmatprep.subr.mxu0 0.0
  %995 = vmatpush2.msra.mxu0 0.0
  %996 = vmatprep.subr.mxu0 0.0
  %997 = vmatpush2.msra.mxu0 0.0
  %998 = vmatprep.subr.mxu0 0.0
  %999 = vmatpush2.msra.mxu0 0.0
  %1000 = vmatprep.mubr.f32.mxu0 0.0
  %v1001 = vand.u32 %v526, 4294901760
  %v1002 = vsub.f32 %v526, %v1001
  %v1003 = vand.u32 %v1002, 4294901760
  %1004 = vmatmul.mubr.f32.gmra.mxu0 %v1003
  %v1005 = vpop.f32.mrf.mxu0
  %v1006 = vadd.f32 %v910, %v1005
  %v1007 = vpop.f32.mrf.mxu0
  %1008 = vmatprep.mubr.f32.mxu0 0.0
  %v1009 = vand.u32 %v527, 4294901760
  %v1010 = vsub.f32 %v527, %v1009
  %v1011 = vand.u32 %v1010, 4294901760
  %1012 = vmatmul.mubr.f32.gmra.mxu0 %v1011
  %v1013 = vpop.f32.mrf.mxu0
  %v1014 = vadd.f32 %v917, %v1013
  %v1015 = vpop.f32.mrf.mxu0
  %1016 = vdwg.mxu0
  %1017 = vmatprep.subr.mxu0 0.0
  %v1018 = vand.u32 %v543, 4294901760
  %v1019 = vsub.f32 %v543, %v1018
  %v1020 = vand.u32 %v1019, 4294901760
  %1021 = vmatpush1.msra.mxu0 %v1020
  %1022 = vmatprep.subr.mxu0 0.0
  %v1023 = vand.u32 %v542, 4294901760
  %v1024 = vsub.f32 %v542, %v1023
  %v1025 = vand.u32 %v1024, 4294901760
  %1026 = vmatpush1.msra.mxu0 %v1025
  %1027 = vmatprep.subr.mxu0 0.0
  %v1028 = vand.u32 %v541, 4294901760
  %v1029 = vsub.f32 %v541, %v1028
  %v1030 = vand.u32 %v1029, 4294901760
  %1031 = vmatpush1.msra.mxu0 %v1030
  %1032 = vmatprep.subr.mxu0 0.0
  %v1033 = vand.u32 %v540, 4294901760
  %v1034 = vsub.f32 %v540, %v1033
  %v1035 = vand.u32 %v1034, 4294901760
  %1036 = vmatpush1.msra.mxu0 %v1035
  %1037 = vmatprep.subr.mxu0 0.0
  %v1038 = vand.u32 %v539, 4294901760
  %v1039 = vsub.f32 %v539, %v1038
  %v1040 = vand.u32 %v1039, 4294901760
  %1041 = vmatpush1.msra.mxu0 %v1040
  %1042 = vmatprep.subr.mxu0 0.0
  %v1043 = vand.u32 %v538, 4294901760
  %v1044 = vsub.f32 %v538, %v1043
  %v1045 = vand.u32 %v1044, 4294901760
  %1046 = vmatpush1.msra.mxu0 %v1045
  %1047 = vmatprep.subr.mxu0 0.0
  %v1048 = vand.u32 %v537, 4294901760
  %v1049 = vsub.f32 %v537, %v1048
  %v1050 = vand.u32 %v1049, 4294901760
  %1051 = vmatpush1.msra.mxu0 %v1050
  %1052 = vmatprep.subr.mxu0 0.0
  %v1053 = vand.u32 %v536, 4294901760
  %v1054 = vsub.f32 %v536, %v1053
  %v1055 = vand.u32 %v1054, 4294901760
  %1056 = vmatpush1.msra.mxu0 %v1055
  %1057 = vmatprep.subr.mxu0 0.0
  %v1058 = vand.u32 %v535, 4294901760
  %v1059 = vsub.f32 %v535, %v1058
  %v1060 = vand.u32 %v1059, 4294901760
  %1061 = vmatpush1.msra.mxu0 %v1060
  %1062 = vmatprep.subr.mxu0 0.0
  %v1063 = vand.u32 %v534, 4294901760
  %v1064 = vsub.f32 %v534, %v1063
  %v1065 = vand.u32 %v1064, 4294901760
  %1066 = vmatpush1.msra.mxu0 %v1065
  %1067 = vmatprep.subr.mxu0 0.0
  %v1068 = vand.u32 %v533, 4294901760
  %v1069 = vsub.f32 %v533, %v1068
  %v1070 = vand.u32 %v1069, 4294901760
  %1071 = vmatpush1.msra.mxu0 %v1070
  %1072 = vmatprep.subr.mxu0 0.0
  %v1073 = vand.u32 %v532, 4294901760
  %v1074 = vsub.f32 %v532, %v1073
  %v1075 = vand.u32 %v1074, 4294901760
  %1076 = vmatpush1.msra.mxu0 %v1075
  %1077 = vmatprep.subr.mxu0 0.0
  %v1078 = vand.u32 %v531, 4294901760
  %v1079 = vsub.f32 %v531, %v1078
  %v1080 = vand.u32 %v1079, 4294901760
  %1081 = vmatpush1.msra.mxu0 %v1080
  %1082 = vmatprep.subr.mxu0 0.0
  %v1083 = vand.u32 %v530, 4294901760
  %v1084 = vsub.f32 %v530, %v1083
  %v1085 = vand.u32 %v1084, 4294901760
  %1086 = vmatpush1.msra.mxu0 %v1085
  %1087 = vmatprep.subr.mxu0 0.0
  %v1088 = vand.u32 %v529, 4294901760
  %v1089 = vsub.f32 %v529, %v1088
  %v1090 = vand.u32 %v1089, 4294901760
  %1091 = vmatpush1.msra.mxu0 %v1090
  %1092 = vmatprep.subr.mxu0 0.0
  %v1093 = vand.u32 %v528, 4294901760
  %v1094 = vsub.f32 %v528, %v1093
  %v1095 = vand.u32 %v1094, 4294901760
  %1096 = vmatpush1.msra.mxu0 %v1095
  %1097 = vmatprep.subr.mxu0 0.0
  %1098 = vmatpush2.msra.mxu0 0.0
  %1099 = vmatprep.subr.mxu0 0.0
  %1100 = vmatpush2.msra.mxu0 0.0
  %1101 = vmatprep.subr.mxu0 0.0
  %1102 = vmatpush2.msra.mxu0 0.0
  %1103 = vmatprep.subr.mxu0 0.0
  %1104 = vmatpush2.msra.mxu0 0.0
  %1105 = vmatprep.subr.mxu0 0.0
  %1106 = vmatpush2.msra.mxu0 0.0
  %1107 = vmatprep.subr.mxu0 0.0
  %1108 = vmatpush2.msra.mxu0 0.0
  %1109 = vmatprep.subr.mxu0 0.0
  %1110 = vmatpush2.msra.mxu0 0.0
  %1111 = vmatprep.subr.mxu0 0.0
  %1112 = vmatpush2.msra.mxu0 0.0
  %1113 = vmatprep.subr.mxu0 0.0
  %1114 = vmatpush2.msra.mxu0 0.0
  %1115 = vmatprep.subr.mxu0 0.0
  %1116 = vmatpush2.msra.mxu0 0.0
  %1117 = vmatprep.subr.mxu0 0.0
  %1118 = vmatpush2.msra.mxu0 0.0
  %1119 = vmatprep.subr.mxu0 0.0
  %1120 = vmatpush2.msra.mxu0 0.0
  %1121 = vmatprep.subr.mxu0 0.0
  %1122 = vmatpush2.msra.mxu0 0.0
  %1123 = vmatprep.subr.mxu0 0.0
  %1124 = vmatpush2.msra.mxu0 0.0
  %1125 = vmatprep.subr.mxu0 0.0
  %1126 = vmatpush2.msra.mxu0 0.0
  %1127 = vmatprep.subr.mxu0 0.0
  %1128 = vmatpush2.msra.mxu0 0.0
  %1129 = vmatprep.mubr.f32.mxu0 0.0
  %v1130 = vand.u32 %v526, 4294901760
  %1131 = vmatmul.mubr.f32.gmra.mxu0 %v1130
  %v1132 = vpop.f32.mrf.mxu0
  %v1133 = vadd.f32 %v1006, %v1132
  %v1134 = vpop.f32.mrf.mxu0
  %1135 = vmatprep.mubr.f32.mxu0 0.0
  %v1136 = vand.u32 %v527, 4294901760
  %1137 = vmatmul.mubr.f32.gmra.mxu0 %v1136
  %v1138 = vpop.f32.mrf.mxu0
  %v1139 = vadd.f32 %v1014, %v1138
  %v1140 = vpop.f32.mrf.mxu0
  %1141 = vdwg.mxu0
  %1142 = vmatprep.subr.mxu0 0.0
  %v1143 = vand.u32 %v543, 4294901760
  %1144 = vmatpush1.msra.mxu0 %v1143
  %1145 = vmatprep.subr.mxu0 0.0
  %v1146 = vand.u32 %v542, 4294901760
  %1147 = vmatpush1.msra.mxu0 %v1146
  %1148 = vmatprep.subr.mxu0 0.0
  %v1149 = vand.u32 %v541, 4294901760
  %1150 = vmatpush1.msra.mxu0 %v1149
  %1151 = vmatprep.subr.mxu0 0.0
  %v1152 = vand.u32 %v540, 4294901760
  %1153 = vmatpush1.msra.mxu0 %v1152
  %1154 = vmatprep.subr.mxu0 0.0
  %v1155 = vand.u32 %v539, 4294901760
  %1156 = vmatpush1.msra.mxu0 %v1155
  %1157 = vmatprep.subr.mxu0 0.0
  %v1158 = vand.u32 %v538, 4294901760
  %1159 = vmatpush1.msra.mxu0 %v1158
  %1160 = vmatprep.subr.mxu0 0.0
  %v1161 = vand.u32 %v537, 4294901760
  %1162 = vmatpush1.msra.mxu0 %v1161
  %1163 = vmatprep.subr.mxu0 0.0
  %v1164 = vand.u32 %v536, 4294901760
  %1165 = vmatpush1.msra.mxu0 %v1164
  %1166 = vmatprep.subr.mxu0 0.0
  %v1167 = vand.u32 %v535, 4294901760
  %1168 = vmatpush1.msra.mxu0 %v1167
  %1169 = vmatprep.subr.mxu0 0.0
  %v1170 = vand.u32 %v534, 4294901760
  %1171 = vmatpush1.msra.mxu0 %v1170
  %1172 = vmatprep.subr.mxu0 0.0
  %v1173 = vand.u32 %v533, 4294901760
  %1174 = vmatpush1.msra.mxu0 %v1173
  %1175 = vmatprep.subr.mxu0 0.0
  %v1176 = vand.u32 %v532, 4294901760
  %1177 = vmatpush1.msra.mxu0 %v1176
  %1178 = vmatprep.subr.mxu0 0.0
  %v1179 = vand.u32 %v531, 4294901760
  %1180 = vmatpush1.msra.mxu0 %v1179
  %1181 = vmatprep.subr.mxu0 0.0
  %v1182 = vand.u32 %v530, 4294901760
  %1183 = vmatpush1.msra.mxu0 %v1182
  %1184 = vmatprep.subr.mxu0 0.0
  %v1185 = vand.u32 %v529, 4294901760
  %1186 = vmatpush1.msra.mxu0 %v1185
  %1187 = vmatprep.subr.mxu0 0.0
  %v1188 = vand.u32 %v528, 4294901760
  %1189 = vmatpush1.msra.mxu0 %v1188
  %1190 = vmatprep.subr.mxu0 0.0
  %1191 = vmatpush2.msra.mxu0 0.0
  %1192 = vmatprep.subr.mxu0 0.0
  %1193 = vmatpush2.msra.mxu0 0.0
  %1194 = vmatprep.subr.mxu0 0.0
  %1195 = vmatpush2.msra.mxu0 0.0
  %1196 = vmatprep.subr.mxu0 0.0
  %1197 = vmatpush2.msra.mxu0 0.0
  %1198 = vmatprep.subr.mxu0 0.0
  %1199 = vmatpush2.msra.mxu0 0.0
  %1200 = vmatprep.subr.mxu0 0.0
  %1201 = vmatpush2.msra.mxu0 0.0
  %1202 = vmatprep.subr.mxu0 0.0
  %1203 = vmatpush2.msra.mxu0 0.0
  %1204 = vmatprep.subr.mxu0 0.0
  %1205 = vmatpush2.msra.mxu0 0.0
  %1206 = vmatprep.subr.mxu0 0.0
  %1207 = vmatpush2.msra.mxu0 0.0
  %1208 = vmatprep.subr.mxu0 0.0
  %1209 = vmatpush2.msra.mxu0 0.0
  %1210 = vmatprep.subr.mxu0 0.0
  %1211 = vmatpush2.msra.mxu0 0.0
  %1212 = vmatprep.subr.mxu0 0.0
  %1213 = vmatpush2.msra.mxu0 0.0
  %1214 = vmatprep.subr.mxu0 0.0
  %1215 = vmatpush2.msra.mxu0 0.0
  %1216 = vmatprep.subr.mxu0 0.0
  %1217 = vmatpush2.msra.mxu0 0.0
  %1218 = vmatprep.subr.mxu0 0.0
  %1219 = vmatpush2.msra.mxu0 0.0
  %1220 = vmatprep.subr.mxu0 0.0
  %1221 = vmatpush2.msra.mxu0 0.0
  %1222 = vmatprep.mubr.f32.mxu0 0.0
  %v1223 = vand.u32 %v526, 4294901760
  %1224 = vmatmul.mubr.f32.gmra.mxu0 %v1223
  %v1225 = vpop.f32.mrf.mxu0
  %v1226 = vadd.f32 %v1133, %v1225
  %v1227 = vpop.f32.mrf.mxu0
  %1228 = vmatprep.mubr.f32.mxu0 0.0
  %v1229 = vand.u32 %v527, 4294901760
  %1230 = vmatmul.mubr.f32.gmra.mxu0 %v1229
  %v1231 = vpop.f32.mrf.mxu0
  %v1232 = vadd.f32 %v1139, %v1231
  %v1233 = vpop.f32.mrf.mxu0
  %1234 = vdwg.mxu0
  %vm1235 = vcmask 31744
  %1236 = vst.msk [vmem:[%s5] sm:$0xff] %vm1235, %v1226
  %1237 = vst.msk [vmem:[%s5 + $0x8] sm:$0xff] %vm1235, %v1232
  // Predicated region
  $region22: #{q_net_forward.1} parent=0 // pred_check
    _
  $region23: #{q_net_forward.1} parent=0 // pred_check_branch
    %1239 = sbr.rel (0) target = $region25
  $region24: #{q_net_forward.1} parent=0 // pred_region
    _
  $region25: #{q_net_forward.1} parent=0 // pred_fallthru
    _
  // Predicated region
  $region26: #{q_net_forward.1} parent=0 // pred_check
    _
  $region27: #{q_net_forward.1} parent=0 // pred_check_branch
    %1241 = sbr.rel (0) target = $region29
  $region28: #{q_net_forward.1} parent=0 // pred_region
    _
  $region29: #{q_net_forward.1} parent=0 // pred_fallthru
    _

</llo_original>
